<compile_context>
chip_gen: v5e
topology: v5e:2x2
jax: 0.10.0
libtpu: 0.0.40
codegen_flags: <defaults>
</compile_context>

<pallas_src>
import functools

import jax
import jax.numpy as jnp
from jax.experimental import pallas as pl
from jax.experimental.pallas import tpu as pltpu


def attention2d_kernel(x_ref, w1_ref, w2_ref, b2_ref, temp_ref, o_ref, acc_ref, *, inv_hw):
    """Grid = (batch, hw_tiles); hw_tiles is the last ('arbitrary') reduction axis.

    x_ref   : (C, THW)  VMEM tile of this batch element's flattened spatial axis
    w1_ref  : (Hid, C)  VMEM  fc1 1x1-conv weight (natural layout, resident)
    w2_ref  : (K, Hid)  VMEM  fc2 1x1-conv weight (natural layout, resident)
    b2_ref  : (K, 1)    VMEM  fc2 bias as a column (resident)
    temp_ref: (1,) f32  SMEM  softmax temperature
    o_ref   : (K, 1)    VMEM  output column for this batch element
    acc_ref : (C, L)    VMEM  f32 per-lane partial-sum accumulator (L = 128 or THW)
    """
    step = pl.program_id(1)
    last = pl.num_programs(1) - 1

    acc_lanes = acc_ref.shape[-1]
    thw = x_ref.shape[-1]
    n_chunks = thw // acc_lanes          # static (compile-time) chunk count

    @pl.when(step == 0)
    def _init():
        acc_ref[...] = jnp.zeros_like(acc_ref)

    # Streaming phase of the global average pool: fold this tile's lanes into the
    # per-lane accumulator with plain VPU adds (no per-tile cross-lane/XLU reduce).
    partial = x_ref[:, 0:acc_lanes].astype(jnp.float32)
    for j in range(1, n_chunks):
        lo = j * acc_lanes
        partial = partial + x_ref[:, lo:lo + acc_lanes].astype(jnp.float32)
    acc_ref[...] += partial

    @pl.when(step == last)
    def _finalize():
        # Single cross-lane reduce for the whole image -> (C, 1) pooled column.
        pooled = jnp.sum(acc_ref[...], axis=-1, keepdims=True) * inv_hw
        # fc1 (1x1 conv, no bias) + ReLU :  (Hid, C) @ (C, 1) -> (Hid, 1)
        h = jnp.dot(w1_ref[...], pooled, preferred_element_type=jnp.float32)
        h = jnp.maximum(h, 0.0)
        # fc2 (1x1 conv, bias)           :  (K, Hid) @ (Hid, 1) + (K, 1) -> (K, 1)
        logits = jnp.dot(w2_ref[...], h, preferred_element_type=jnp.float32) + b2_ref[...]
        # softmax(logits / temperature) over K, numerically stable.
        logits = logits * (1.0 / temp_ref[0])
        m = jnp.max(logits, axis=0, keepdims=True)
        e = jnp.exp(logits - m)
        denom = jnp.sum(e, axis=0, keepdims=True)
        o_ref[...] = (e * pl.reciprocal(denom, approx=True)).astype(o_ref.dtype)


def _choose_hw_block(hw, c, itemsize, *, target_lanes=2048, max_block_bytes=4 << 20):
    """Largest HW tile that is a multiple of 128, divides HW, and stays <= 4 MiB/buffer.

    The per-buffer cap keeps 2x double-buffered x tiles + weights + scratch inside the
    default scoped-VMEM limit on every generation (v5e 16 MiB, v6e/v7x 32 MiB scoped).
    """
    if hw % 128 != 0:
        return hw                         # only legal tile is the full spatial extent
    cap = max(128, (max_block_bytes // max(1, c * itemsize)) // 128 * 128)
    t = max(128, min(hw, target_lanes, cap) // 128 * 128)
    while hw % t != 0:
        t -= 128
    return t


def attention2d_forward(x, w1, w2, b2, temperature, *, hw_block=None):
    """x: (B, C, H, W);  w1: (Hid, C) fc1 1x1-conv weight (1x1 squeezed);
       w2: (K, Hid) fc2 1x1-conv weight;  b2: (K,) fc2 bias;  temperature: scalar."""
    B, C, H, W = x.shape
    HW = H * W
    Hid = w1.shape[0]
    K = w2.shape[0]

    # Wrapper-side layout plumbing (free): flatten spatial so the pool is a lane
    # reduction; bias as a column; temperature as an SMEM scalar.
    x_flat = x.reshape(B, C, HW)
    b2c = b2.reshape(K, 1)
    temp = jnp.asarray([temperature], dtype=jnp.float32)

    if hw_block is None:
        hw_block = _choose_hw_block(HW, C, x.dtype.itemsize)
    assert HW % hw_block == 0
    acc_lanes = 128 if hw_block % 128 == 0 else hw_block

    kernel = functools.partial(attention2d_kernel, inv_hw=1.0 / float(HW))

    out = pl.pallas_call(
        kernel,
        out_shape=jax.ShapeDtypeStruct((B, K, 1), x.dtype),
        grid=(B, HW // hw_block),
        in_specs=[
            pl.BlockSpec((None, C, hw_block), lambda b, s: (b, 0, s)),   # x (streamed)
            pl.BlockSpec((Hid, C), lambda b, s: (0, 0)),                 # fc1 weight (resident)
            pl.BlockSpec((K, Hid), lambda b, s: (0, 0)),                 # fc2 weight (resident)
            pl.BlockSpec((K, 1), lambda b, s: (0, 0)),                   # fc2 bias (resident)
            pl.BlockSpec(memory_space=pltpu.MemorySpace.SMEM),           # temperature scalar
        ],
        out_specs=pl.BlockSpec((None, K, 1), lambda b, s: (b, 0, 0)),
        scratch_shapes=[pltpu.VMEM((C, acc_lanes), jnp.float32)],
        compiler_params=pltpu.CompilerParams(
            dimension_semantics=("parallel", "arbitrary")),
    )(x_flat, w1, w2, b2c, temp)

    return out.reshape(B, K)


def attention2d_reference(x, w1, w2, b2, temperature):
    # Pure-JAX reference matching PyTorch semantics exactly.
    pooled = jnp.mean(x, axis=(2, 3))                      # AdaptiveAvgPool2d(1)
    h = jnp.maximum(pooled @ w1.T, 0.0)                    # fc1 (1x1 conv, no bias) + relu
    logits = h @ w2.T + b2                                 # fc2 (1x1 conv, bias) -> view(B, -1)
    return jax.nn.softmax(logits / temperature, axis=1)    # softmax(x / temperature, 1)


if __name__ == "__main__":
    # Shapes implied by the module: in_planes=16, ratios=0.25 -> hidden = int(16*0.25)+1 = 5,
    # K=4 experts, temperature=4 (satisfies temperature % 3 == 1), spatial 16x16, batch 2.
    B, in_planes, H, W = 2, 16, 16, 16
    ratios, K, temperature = 0.25, 4, 4
    hidden_planes = int(in_planes * ratios) + 1            # 5

    key = jax.random.PRNGKey(0)
    kx, k1, k2, kb = jax.random.split(key, 4)

    x = jax.random.normal(kx, (B, in_planes, H, W), dtype=jnp.float32)
    # Deterministic synthetic parameters (1x1-conv weights with the trailing 1x1 squeezed).
    w1 = jax.random.normal(k1, (hidden_planes, in_planes), dtype=jnp.float32) * 0.1
    w2 = jax.random.normal(k2, (K, hidden_planes), dtype=jnp.float32) * 0.1
    b2 = jax.random.normal(kb, (K,), dtype=jnp.float32) * 0.1

    ref = attention2d_reference(x, w1, w2, b2, float(temperature))

    # Default tile: full 256-lane spatial extent (single reduction step).
    out_a = jax.block_until_ready(attention2d_forward(x, w1, w2, b2, float(temperature)))
    # Forced 128-lane tile: 2 reduction steps, exercising the pl.when init/finalize path.
    out_b = jax.block_until_ready(
        attention2d_forward(x, w1, w2, b2, float(temperature), hw_block=128))

    assert out_a.shape == (B, K) and out_b.shape == (B, K)
    # approx-reciprocal softmax denominator -> slightly loose tolerance.
    assert jnp.allclose(out_a, ref, atol=2e-3, rtol=2e-3), "default-tile mismatch vs reference"
    assert jnp.allclose(out_b, ref, atol=2e-3, rtol=2e-3), "tiled mismatch vs reference"
    assert jnp.allclose(jnp.sum(out_a, axis=1), 1.0, atol=2e-3), "softmax rows must sum to 1"

    print("KERNEL_OK")
</pallas_src>

<mosaic_0001>
module attributes {stable_mosaic.version = 11 : i64} {
  func.func @attention2d_kernel(%arg0: i32, %arg1: i32, %arg2: memref<1x16x256xf32, #tpu.memory_space<vmem>>, %arg3: memref<5x16xf32, #tpu.memory_space<vmem>>, %arg4: memref<4x5xf32, #tpu.memory_space<vmem>>, %arg5: memref<4x1xf32, #tpu.memory_space<vmem>>, %arg6: memref<1xf32, #tpu.memory_space<smem>>, %arg7: memref<1x4x1xf32, #tpu.memory_space<vmem>>, %arg8: memref<16x128xf32, #tpu.memory_space<vmem>>) attributes {dimension_semantics = [#tpu.dimension_semantics<parallel>, #tpu.dimension_semantics<arbitrary>], iteration_bounds = array<i64: 2, 1>, scalar_prefetch = 0 : i64, scratch_operands = 1 : i64, tpu.core_type = #tpu.core_type<tc>, window_params = [{transform_indices = @transform_0, window_bounds = array<i64: 1, 16, 256>}, {pipeline_mode = #tpu.pipeline_mode<synchronous>, transform_indices = @transform_1, window_bounds = array<i64: 5, 16>}, {pipeline_mode = #tpu.pipeline_mode<synchronous>, transform_indices = @transform_2, window_bounds = array<i64: 4, 5>}, {pipeline_mode = #tpu.pipeline_mode<synchronous>, transform_indices = @transform_3, window_bounds = array<i64: 4, 1>}, {transform_indices = @transform_4, window_bounds = array<i64: 1>}, {transform_indices = @transform_5, window_bounds = array<i64: 1, 4, 1>}]} {
    %c0_i32 = arith.constant 0 : i32
    %0 = arith.cmpi eq, %arg1, %c0_i32 : i32
    %1 = arith.extui %0 : i1 to i32
    %c0_i32_0 = arith.constant 0 : i32
    %2 = arith.cmpi ne, %1, %c0_i32_0 : i32
    scf.if %2 {
      %cst = arith.constant 0.000000e+00 : f32
      %14 = vector.broadcast %cst : f32 to vector<16x128xf32>
      %c0_11 = arith.constant 0 : index
      %c0_12 = arith.constant 0 : index
      %15 = vector.load %arg8[%c0_11, %c0_12] : memref<16x128xf32, #tpu.memory_space<vmem>>, vector<16x128xf32>
      tpu.vector_store %arg8[%c0_11, %c0_12], %14 {strides = array<i32>} : memref<16x128xf32, #tpu.memory_space<vmem>>, vector<16x128xf32>,
    } else {
    }
    %c0 = arith.constant 0 : index
    %c0_1 = arith.constant 0 : index
    %c0_2 = arith.constant 0 : index
    %3 = vector.load %arg2[%c0, %c0_1, %c0_2] : memref<1x16x256xf32, #tpu.memory_space<vmem>>, vector<1x16x128xf32>
    %4 = vector.shape_cast %3 : vector<1x16x128xf32> to vector<16x128xf32>
    %c0_3 = arith.constant 0 : index
    %c0_4 = arith.constant 0 : index
    %c128 = arith.constant 128 : index
    %5 = vector.load %arg2[%c0_3, %c0_4, %c128] : memref<1x16x256xf32, #tpu.memory_space<vmem>>, vector<1x16x128xf32>
    %6 = vector.shape_cast %5 : vector<1x16x128xf32> to vector<16x128xf32>
    %7 = arith.addf %4, %6 : vector<16x128xf32>
    %c0_5 = arith.constant 0 : index
    %c0_6 = arith.constant 0 : index
    %8 = vector.load %arg8[%c0_5, %c0_6] : memref<16x128xf32, #tpu.memory_space<vmem>>, vector<16x128xf32>
    %9 = arith.addf %8, %7 : vector<16x128xf32>
    %c0_7 = arith.constant 0 : index
    %c0_8 = arith.constant 0 : index
    %10 = vector.load %arg8[%c0_7, %c0_8] : memref<16x128xf32, #tpu.memory_space<vmem>>, vector<16x128xf32>
    tpu.vector_store %arg8[%c0_7, %c0_8], %9 {strides = array<i32>} : memref<16x128xf32, #tpu.memory_space<vmem>>, vector<16x128xf32>,
    %c0_i32_9 = arith.constant 0 : i32
    %11 = arith.cmpi eq, %arg1, %c0_i32_9 : i32
    %12 = arith.extui %11 : i1 to i32
    %c0_i32_10 = arith.constant 0 : i32
    %13 = arith.cmpi ne, %12, %c0_i32_10 : i32
    scf.if %13 {
      %c0_11 = arith.constant 0 : index
      %c0_12 = arith.constant 0 : index
      %14 = vector.load %arg8[%c0_11, %c0_12] : memref<16x128xf32, #tpu.memory_space<vmem>>, vector<16x128xf32>
      %cst = arith.constant dense<0.000000e+00> : vector<16xf32>
      %15 = vector.multi_reduction <add>, %14, %cst [1] : vector<16x128xf32> to vector<16xf32>
      %16 = vector.shape_cast %15 : vector<16xf32> to vector<16x1xf32>
      %cst_13 = arith.constant 3.906250e-03 : f32
      %17 = vector.broadcast %cst_13 : f32 to vector<16x1xf32>
      %18 = arith.mulf %16, %17 : vector<16x1xf32>
      %c0_14 = arith.constant 0 : index
      %c0_15 = arith.constant 0 : index
      %19 = vector.load %arg3[%c0_14, %c0_15] : memref<5x16xf32, #tpu.memory_space<vmem>>, vector<5x16xf32>
      %cst_16 = arith.constant dense<0.000000e+00> : vector<5x1xf32>
      %20 = tpu.matmul %19, %18, %cst_16 {dimension_numbers = #tpu.dot_dimension_numbers<[1], [0], [0], [1], [0, 0, 1, 1], [], []>} : vector<5x16xf32>, vector<16x1xf32>, vector<5x1xf32> -> vector<5x1xf32>
      %cst_17 = arith.constant 0.000000e+00 : f32
      %21 = vector.broadcast %cst_17 : f32 to vector<5x1xf32>
      %22 = arith.maximumf %20, %21 : vector<5x1xf32>
      %c0_18 = arith.constant 0 : index
      %c0_19 = arith.constant 0 : index
      %23 = vector.load %arg4[%c0_18, %c0_19] : memref<4x5xf32, #tpu.memory_space<vmem>>, vector<4x5xf32>
      %cst_20 = arith.constant dense<0.000000e+00> : vector<4x1xf32>
      %24 = tpu.matmul %23, %22, %cst_20 {dimension_numbers = #tpu.dot_dimension_numbers<[1], [0], [0], [1], [0, 0, 1, 1], [], []>} : vector<4x5xf32>, vector<5x1xf32>, vector<4x1xf32> -> vector<4x1xf32>
      %c0_21 = arith.constant 0 : index
      %c0_22 = arith.constant 0 : index
      %25 = vector.load %arg5[%c0_21, %c0_22] : memref<4x1xf32, #tpu.memory_space<vmem>>, vector<4x1xf32>
      %26 = arith.addf %24, %25 : vector<4x1xf32>
      %c0_23 = arith.constant 0 : index
      %27 = memref.load %arg6[%c0_23] : memref<1xf32, #tpu.memory_space<smem>>
      %cst_24 = arith.constant 1.000000e+00 : f32
      %28 = arith.divf %cst_24, %27 : f32
      %29 = vector.broadcast %28 : f32 to vector<4x1xf32>
      %30 = arith.mulf %26, %29 : vector<4x1xf32>
      %cst_25 = arith.constant dense<0xFF800000> : vector<1xf32>
      %31 = vector.multi_reduction <maximumf>, %30, %cst_25 [0] : vector<4x1xf32> to vector<1xf32>
      %32 = vector.shape_cast %31 : vector<1xf32> to vector<1x1xf32>
      %33 = vector.broadcast %32 : vector<1x1xf32> to vector<4x1xf32>
      %34 = arith.subf %30, %33 : vector<4x1xf32>
      %35 = math.exp %34 : vector<4x1xf32>
      %cst_26 = arith.constant dense<0.000000e+00> : vector<1xf32>
      %36 = vector.multi_reduction <add>, %35, %cst_26 [0] : vector<4x1xf32> to vector<1xf32>
      %37 = vector.shape_cast %36 : vector<1xf32> to vector<1x1xf32>
      %38 = tpu.reciprocal %37 {approx = true} : vector<1x1xf32> -> vector<1x1xf32>
      %39 = vector.broadcast %38 : vector<1x1xf32> to vector<4x1xf32>
      %40 = arith.mulf %35, %39 : vector<4x1xf32>
      %c0_27 = arith.constant 0 : index
      %c0_28 = arith.constant 0 : index
      %c0_29 = arith.constant 0 : index
      %41 = vector.load %arg7[%c0_27, %c0_28, %c0_29] : memref<1x4x1xf32, #tpu.memory_space<vmem>>, vector<1x4x1xf32>
      %42 = vector.shape_cast %41 : vector<1x4x1xf32> to vector<4x1xf32>
      %43 = vector.shape_cast %40 : vector<4x1xf32> to vector<1x4x1xf32>
      tpu.vector_store %arg7[%c0_27, %c0_28, %c0_29], %43 {strides = array<i32>} : memref<1x4x1xf32, #tpu.memory_space<vmem>>, vector<1x4x1xf32>,
    } else {
    }
    return
  }
  func.func @transform_0(%arg0: i32, %arg1: i32) -> (i32, i32, i32) {
    %c0_i32 = arith.constant 0 : i32
    %c0_i32_0 = arith.constant 0 : i32
    return %arg0, %c0_i32, %arg1 : i32, i32, i32
  }
  func.func @transform_1(%arg0: i32, %arg1: i32) -> (i32, i32) {
    %c0_i32 = arith.constant 0 : i32
    %c0_i32_0 = arith.constant 0 : i32
    %c0_i32_1 = arith.constant 0 : i32
    return %c0_i32, %c0_i32_0 : i32, i32
  }
  func.func @transform_2(%arg0: i32, %arg1: i32) -> (i32, i32) {
    %c0_i32 = arith.constant 0 : i32
    %c0_i32_0 = arith.constant 0 : i32
    %c0_i32_1 = arith.constant 0 : i32
    return %c0_i32, %c0_i32_0 : i32, i32
  }
  func.func @transform_3(%arg0: i32, %arg1: i32) -> (i32, i32) {
    %c0_i32 = arith.constant 0 : i32
    %c0_i32_0 = arith.constant 0 : i32
    %c0_i32_1 = arith.constant 0 : i32
    return %c0_i32, %c0_i32_0 : i32, i32
  }
  func.func @transform_4(%arg0: i32, %arg1: i32) -> i32 {
    %c0_i32 = arith.constant 0 : i32
    %c0_i32_0 = arith.constant 0 : i32
    return %c0_i32 : i32
  }
  func.func @transform_5(%arg0: i32, %arg1: i32) -> (i32, i32, i32) {
    %c0_i32 = arith.constant 0 : i32
    %c0_i32_0 = arith.constant 0 : i32
    %c0_i32_1 = arith.constant 0 : i32
    return %arg0, %c0_i32, %c0_i32_0 : i32, i32, i32
  }
}

</mosaic_0001>

<llo_original>
// kernel: tpu_custom_call.1
$region0: #{tpu_custom_call.1}
  #allocation0 [shape = 'u32[]', space=smem, size = 0x4, offset = 0x4, fixed_abs, tag = 'smem constant byte address 0x4 - core index']
  #allocation1 [shape = 'u32[72,128]{1,0:T(1,128)}', space=vmem, size = 0x9000, scoped, tag = 'internal scratch']
  #allocation2 [shape = 'f32[16,128]{1,0:T(8,128)}', space=vmem, size = 0x2000, scoped, tag = 'scratch operand']
  #allocation3 [shape = 'f32[1]{0:T(128)S(6)}', space=smem, size = 0x200, scoped, tag = 'scoped memory for tpu_custom_call.1']
  %s0 = inlined_call_operand.hbm [shape: f32[2,16,256], index: 0, kind: input, shape index: {}]
  %s1 = inlined_call_operand.hbm [shape: f32[5,16], index: 1, kind: input, shape index: {}]
  %s2 = inlined_call_operand.vmem [shape: f32[4,5], index: 2, kind: input, shape index: {}]
  %s3 = inlined_call_operand.vmem [shape: f32[4,1], index: 3, kind: input, shape index: {}]
  %s4 = inlined_call_operand.<no memory space> [shape: f32[1], index: 4, kind: input, shape index: {}]
  %s5 = inlined_call_operand.vmem [shape: f32[2,4,1], index: 5, kind: output, shape index: {}]
  %s6 = sld [smem:[#allocation0]]
  $region69: #{tpu_custom_call.1} parent=0
    _
  %s8 = ssub.s32 1, %s6
  %s9 = scalar_select 0, %s8, %s6
  %10 = sst [smem:[#allocation3]] %s4
  $region1: #{tpu_custom_call.1} parent=0
    #allocation4 [shape = 'u8[32768]{0}', space=vmem, size = 0x8000, scoped, tag = 'input window, operand 0']
    #allocation5 [shape = 's32[2]{0}', space=sflag, size = 0x8, scoped, tag = 'scoped memory for tpu_custom_call.1']
    #allocation6 [shape = 'u8[4096]{0}', space=vmem, size = 0x1000, scoped, tag = 'input window, operand 1, single buffered']
    #allocation7 [shape = 's32[1]{0}', space=sflag, size = 0x4, scoped, tag = 'scoped memory for tpu_custom_call.1']
    %11 = vsyncpa [#allocation5], 0
    %s12 = scalar_lea.sflag [#allocation5], 1
    %13 = vsyncpa %s12, 0
    %14 = vsyncpa [#allocation7], 0
    loop: start=0, step=1, limit=4
    $region2: #{tpu_custom_call.1} parent=1 // loop_pre_header
      _
    $region3: #{tpu_custom_call.1} parent=1 // loop_header
      %s16 = sphi 0, %s20
      %p17 = scmp.ge.s32.totalorder %s16, 4
      %s23 = sphi 0, %s35
      %s24 = sphi 0, %s31
      %s25 = sphi 0, %s23
      %s26 = sphi 0, %s24
      %s27 = sphi 0, %s25
      %s28 = sphi 0, %s26
      %s40 = sphi 0, %s42
      %s43 = sphi 0, %s40
      %s44 = sphi 0, %s43
      %s60 = sphi 0, %s44
      %s64 = sphi 0, %s64
      %s66 = sphi 0, %s64
      %s67 = sphi 0, %s66
      %s81 = sphi 0, %s67
      %s85 = sphi 0, %s85
      %s87 = sphi 0, %s85
      %s88 = sphi 0, %s87
      %s102 = sphi 0, %s88
      %s106 = sphi 0, %s106
      %s108 = sphi 0, %s106
      %s109 = sphi 0, %s108
      %s123 = sphi 0, %s109
      %s127 = sphi 0, %s127
      %s129 = sphi 0, %s127
      %s130 = sphi 0, %s129
      %s144 = sphi 0, %s130
      %s150 = sphi 0, %s152
      %s153 = sphi 0, %s150
      %s154 = sphi 0, %s153
      %s170 = sphi 0, %s154
    $region4: #{tpu_custom_call.1} parent=1 // loop_header_branch
      %19 = sbr.rel (%p17) target = $region8
    $region5: #{tpu_custom_call.1} parent=1 // loop_body
      %s21 = ssub.s32 %s16, 1
      %s22 = ssub.s32 %s16, 2
      %s29 = sadd.s32 1, %s24
      %p30 = scmp.ge.s32.totalorder %s29, 1
      %s31 = scalar_select %p30, 0, %s29
      %s32 = sadd.s32 1, %s23
      %s33 = scalar_select %p30, %s32, %s23
      %p34 = scmp.ge.s32.totalorder %s33, 2
      %s35 = scalar_select %p34, 0, %s33
      %s36 = ssub.s32 %s23, %s35
      %s37 = ssub.s32 %s24, %s31
      %s38 = sor.u32 %s36, %s37
      %p39 = scmp.eq.s32.totalorder %s38, 0
      %s41 = sadd.s32 %s40, 1
      %s42 = scalar_select %p39, %s40, %s41
      %p45 = pneg %p39
      %p46 = scmp.eq.s32.totalorder %s16, 1
      %p47 = por %p45, %p46
      %p48 = scmp.ne.s32.totalorder %s40, %s43
      %p49 = scmp.eq.s32.totalorder %s16, 0
      %p50 = por %p48, %p49
      %p51 = scmp.ne.s32.totalorder %s40, %s43
      %p52 = scmp.eq.s32.totalorder %s21, 1
      %p53 = por %p51, %p52
      %p54 = scmp.ne.s32.totalorder %s43, %s44
      %p55 = scmp.eq.s32.totalorder %s21, 0
      %p56 = por %p54, %p55
      %p57 = scmp.ne.s32.totalorder %s43, %s44
      %p58 = scmp.eq.s32.totalorder %s22, 1
      %p59 = por %p57, %p58
      %p61 = scmp.ne.s32.totalorder %s44, %s60
      %p62 = scmp.eq.s32.totalorder %s22, 0
      %p63 = por %p61, %p62
      %s65 = sadd.s32 %s64, 1
      %p68 = scmp.eq.s32.totalorder %s16, 1
      %p69 = scmp.ne.s32.totalorder %s64, %s66
      %p70 = scmp.eq.s32.totalorder %s16, 0
      %p71 = por %p69, %p70
      %p72 = scmp.ne.s32.totalorder %s64, %s66
      %p73 = scmp.eq.s32.totalorder %s21, 1
      %p74 = por %p72, %p73
      %p75 = scmp.ne.s32.totalorder %s66, %s67
      %p76 = scmp.eq.s32.totalorder %s21, 0
      %p77 = por %p75, %p76
      %p78 = scmp.ne.s32.totalorder %s66, %s67
      %p79 = scmp.eq.s32.totalorder %s22, 1
      %p80 = por %p78, %p79
      %p82 = scmp.ne.s32.totalorder %s67, %s81
      %p83 = scmp.eq.s32.totalorder %s22, 0
      %p84 = por %p82, %p83
      %s86 = sadd.s32 %s85, 1
      %p89 = scmp.eq.s32.totalorder %s16, 1
      %p90 = scmp.ne.s32.totalorder %s85, %s87
      %p91 = scmp.eq.s32.totalorder %s16, 0
      %p92 = por %p90, %p91
      %p93 = scmp.ne.s32.totalorder %s85, %s87
      %p94 = scmp.eq.s32.totalorder %s21, 1
      %p95 = por %p93, %p94
      %p96 = scmp.ne.s32.totalorder %s87, %s88
      %p97 = scmp.eq.s32.totalorder %s21, 0
      %p98 = por %p96, %p97
      %p99 = scmp.ne.s32.totalorder %s87, %s88
      %p100 = scmp.eq.s32.totalorder %s22, 1
      %p101 = por %p99, %p100
      %p103 = scmp.ne.s32.totalorder %s88, %s102
      %p104 = scmp.eq.s32.totalorder %s22, 0
      %p105 = por %p103, %p104
      %s107 = sadd.s32 %s106, 1
      %p110 = scmp.eq.s32.totalorder %s16, 1
      %p111 = scmp.ne.s32.totalorder %s106, %s108
      %p112 = scmp.eq.s32.totalorder %s16, 0
      %p113 = por %p111, %p112
      %p114 = scmp.ne.s32.totalorder %s106, %s108
      %p115 = scmp.eq.s32.totalorder %s21, 1
      %p116 = por %p114, %p115
      %p117 = scmp.ne.s32.totalorder %s108, %s109
      %p118 = scmp.eq.s32.totalorder %s21, 0
      %p119 = por %p117, %p118
      %p120 = scmp.ne.s32.totalorder %s108, %s109
      %p121 = scmp.eq.s32.totalorder %s22, 1
      %p122 = por %p120, %p121
      %p124 = scmp.ne.s32.totalorder %s109, %s123
      %p125 = scmp.eq.s32.totalorder %s22, 0
      %p126 = por %p124, %p125
      %s128 = sadd.s32 %s127, 1
      %p131 = scmp.eq.s32.totalorder %s16, 1
      %p132 = scmp.ne.s32.totalorder %s127, %s129
      %p133 = scmp.eq.s32.totalorder %s16, 0
      %p134 = por %p132, %p133
      %p135 = scmp.ne.s32.totalorder %s127, %s129
      %p136 = scmp.eq.s32.totalorder %s21, 1
      %p137 = por %p135, %p136
      %p138 = scmp.ne.s32.totalorder %s129, %s130
      %p139 = scmp.eq.s32.totalorder %s21, 0
      %p140 = por %p138, %p139
      %p141 = scmp.ne.s32.totalorder %s129, %s130
      %p142 = scmp.eq.s32.totalorder %s22, 1
      %p143 = por %p141, %p142
      %p145 = scmp.ne.s32.totalorder %s130, %s144
      %p146 = scmp.eq.s32.totalorder %s22, 0
      %p147 = por %p145, %p146
      %s148 = ssub.s32 %s23, %s35
      %p149 = scmp.eq.s32.totalorder %s148, 0
      %s151 = sadd.s32 %s150, 1
      %s152 = scalar_select %p149, %s150, %s151
      %p155 = pneg %p149
      %p156 = scmp.eq.s32.totalorder %s16, 1
      %p157 = por %p155, %p156
      %p158 = scmp.ne.s32.totalorder %s150, %s153
      %p159 = scmp.eq.s32.totalorder %s16, 0
      %p160 = por %p158, %p159
      %p161 = scmp.ne.s32.totalorder %s150, %s153
      %p162 = scmp.eq.s32.totalorder %s21, 1
      %p163 = por %p161, %p162
      %p164 = scmp.ne.s32.totalorder %s153, %s154
      %p165 = scmp.eq.s32.totalorder %s21, 0
      %p166 = por %p164, %p165
      %p167 = scmp.ne.s32.totalorder %s153, %s154
      %p168 = scmp.eq.s32.totalorder %s22, 1
      %p169 = por %p167, %p168
      %p171 = scmp.ne.s32.totalorder %s154, %s170
      %p172 = scmp.eq.s32.totalorder %s22, 0
      %p173 = por %p171, %p172
      %p174 = scmp.le.s32.totalorder 1, %s16
      %p175 = scmp.lt.s32.totalorder %s16, 3
      %p176 = pnand %p174, %p175
      %p177 = pneg %p176
      // Predicated region
      $region9: #{tpu_custom_call.1} parent=5 // pred_check
        _
      $region10: #{tpu_custom_call.1} parent=5 // pred_check_branch
        %179 = sbr.rel (%p176) target = $region12
      $region11: #{tpu_custom_call.1} parent=5 // pred_region
        %s180 = ssub.s32 %s16, 1
        // Predicated region
        $region13: #{tpu_custom_call.1} parent=11 // pred_check
          %p181 = pneg %p77
        $region14: #{tpu_custom_call.1} parent=11 // pred_check_branch
          %183 = sbr.rel (%p181) target = $region16
        $region15: #{tpu_custom_call.1} parent=11 // pred_region
          %185 = vsyncadd [#allocation7], 0
          %s187 = sshll.u32 %s1, 4
          %s188 = int_to_ptr.hbm [resolvable:$true] %s187
          %s189 = sshll.u32 [#allocation6], 4
          %s190 = int_to_ptr.vmem [resolvable:$true] %s189
          %192 = dma.hbm_to_vmem [thread:$0]  %s188, 128, %s190, [#allocation7]
        $region16: #{tpu_custom_call.1} parent=11 // pred_fallthru
          _
        // Predicated region
        $region17: #{tpu_custom_call.1} parent=11 // pred_check
          %p193 = pneg %p98
        $region18: #{tpu_custom_call.1} parent=11 // pred_check_branch
          %195 = sbr.rel (%p193) target = $region20
        $region19: #{tpu_custom_call.1} parent=11 // pred_region
          _
        $region20: #{tpu_custom_call.1} parent=11 // pred_fallthru
          _
        // Predicated region
        $region21: #{tpu_custom_call.1} parent=11 // pred_check
          %p196 = pneg %p119
        $region22: #{tpu_custom_call.1} parent=11 // pred_check_branch
          %198 = sbr.rel (%p196) target = $region24
        $region23: #{tpu_custom_call.1} parent=11 // pred_region
          _
        $region24: #{tpu_custom_call.1} parent=11 // pred_fallthru
          _
        // Predicated region
        $region25: #{tpu_custom_call.1} parent=11 // pred_check
          %p199 = pneg %p140
        $region26: #{tpu_custom_call.1} parent=11 // pred_check_branch
          %201 = sbr.rel (%p199) target = $region28
        $region27: #{tpu_custom_call.1} parent=11 // pred_region
          _
        $region28: #{tpu_custom_call.1} parent=11 // pred_fallthru
          _
      $region12: #{tpu_custom_call.1} parent=5 // pred_fallthru
        _
      %p202 = scmp.lt.s32.totalorder %s16, 2
      // Predicated region
      $region29: #{tpu_custom_call.1} parent=5 // pred_check
        %p203 = pneg %p202
      $region30: #{tpu_custom_call.1} parent=5 // pred_check_branch
        %205 = sbr.rel (%p203) target = $region32
      $region31: #{tpu_custom_call.1} parent=5 // pred_region
        // Predicated region
        $region33: #{tpu_custom_call.1} parent=31 // pred_check
          %p206 = pneg %p50
        $region34: #{tpu_custom_call.1} parent=31 // pred_check_branch
          %208 = sbr.rel (%p206) target = $region36
        $region35: #{tpu_custom_call.1} parent=31 // pred_region
          %s209 = sand.u32 %s40, 1
          %s210 = scalar_lea.sflag [#allocation5], %s209
          %s211 = sand.u32 %s40, 1
          %s212 = smul.addr %s211, 32
          %s213 = scalar_lea.vmem [#allocation4], %s212
          %s214 = smul.u32 2, %s24
          %216 = vsyncadd %s210, 0
          %s217 = smul.addr %s23, 4
          %s218 = sadd.s32 %s214, %s217
          %s219 = smul.addr %s218, 8
          %s220 = scalar_lea.hbm %s0, %s219
          %s221 = sshll.u32 %s220, 4
          %s222 = int_to_ptr.hbm [resolvable:$true] %s221
          %s223 = sshll.u32 %s213, 4
          %s224 = int_to_ptr.vmem [resolvable:$true] %s223
          %229 = dma.hbm_to_vmem [thread:$0]  %s222, 512, %s224, %s210, 256, 256, 16
        $region36: #{tpu_custom_call.1} parent=31 // pred_fallthru
          _
      $region32: #{tpu_custom_call.1} parent=5 // pred_fallthru
        _
      %p230 = scmp.le.s32.totalorder 1, %s16
      %p231 = scmp.lt.s32.totalorder %s16, 3
      %p232 = pnand %p230, %p231
      %p233 = pneg %p232
      // Predicated region
      $region37: #{tpu_custom_call.1} parent=5 // pred_check
        _
      $region38: #{tpu_custom_call.1} parent=5 // pred_check_branch
        %235 = sbr.rel (%p232) target = $region40
      $region39: #{tpu_custom_call.1} parent=5 // pred_region
        %s236 = ssub.s32 %s16, 1
        %s237 = sand.u32 %s43, 1
        %s238 = scalar_lea.sflag [#allocation5], %s237
        %s239 = sand.u32 %s43, 1
        %s240 = smul.addr %s239, 32
        %s241 = scalar_lea.vmem [#allocation4], %s240
        // Predicated region
        $region41: #{tpu_custom_call.1} parent=39 // pred_check
          %p242 = pneg %p56
        $region42: #{tpu_custom_call.1} parent=39 // pred_check_branch
          %244 = sbr.rel (%p242) target = $region44
        $region43: #{tpu_custom_call.1} parent=39 // pred_region
          %246 = dma.done %s238, 512
        $region44: #{tpu_custom_call.1} parent=39 // pred_fallthru
          _
        // Predicated region
        $region45: #{tpu_custom_call.1} parent=39 // pred_check
          %p247 = pneg %p77
        $region46: #{tpu_custom_call.1} parent=39 // pred_check_branch
          %249 = sbr.rel (%p247) target = $region48
        $region47: #{tpu_custom_call.1} parent=39 // pred_region
          %251 = dma.done [#allocation7], 128
        $region48: #{tpu_custom_call.1} parent=39 // pred_fallthru
          _
        %s252 = sand.u32 %s43, 1
        %s253 = scalar_lea.sflag [#allocation5], %s252
        %s254 = sand.u32 %s43, 1
        %s255 = smul.addr %s254, 32
        %s256 = scalar_lea.vmem [#allocation4], %s255
        %p257 = pneg %p56
        %p258 = pneg %p53
        %p259 = pneg %p77
        %p260 = pneg %p74
        %p261 = pneg %p98
        %p262 = pneg %p95
        %p263 = pneg %p119
        %p264 = pneg %p116
        %p265 = pneg %p140
        %p266 = pneg %p137
        %p267 = pneg %p166
        %p268 = pneg %p163
        %p269 = scmp.lt.s32.totalorder %s25, 1
        %s270 = scalar_select %p269, %s25, 1
        %s271 = smul.addr %s270, 4
        %s272 = scalar_lea.vmem %s5, %s271
        %s273 = smul.u32 2, %s26
        %p274 = scmp.lt.s32.totalorder %s25, 1
        %s275 = scalar_select %p274, %s25, 1
        %s276 = smul.addr %s275, 4
        %s277 = scalar_lea.vmem %s5, %s276
        %p278 = scmp.eq.s32.totalorder %s26, 0
        // Predicated region
        $region49: #{tpu_custom_call.1} parent=39 // pred_check
          %p279 = pneg %p278
        $region50: #{tpu_custom_call.1} parent=39 // pred_check_branch
          %281 = sbr.rel (%p279) target = $region52
        $region51: #{tpu_custom_call.1} parent=39 // pred_region
          %282 = vst [vmem:[#allocation2] sm:$0xff] 0.0
          %283 = vst [vmem:[#allocation2 + $0x8] sm:$0xff] 0.0
        $region52: #{tpu_custom_call.1} parent=39 // pred_fallthru
          _
        %v284 = vld [vmem:[%s241] sm:$0xff]
        %v285 = vld [vmem:[%s241 + $0x10] sm:$0xff]
        %v286 = vld [vmem:[%s241 + $0x8] sm:$0xff]
        %v287 = vld [vmem:[%s241 + $0x18] sm:$0xff]
        %v288 = vadd.f32 %v284, %v286
        %v289 = vadd.f32 %v285, %v287
        %v290 = vld [vmem:[#allocation2] sm:$0xff]
        %v291 = vld [vmem:[#allocation2 + $0x8] sm:$0xff]
        %v292 = vadd.f32 %v290, %v288
        %v293 = vadd.f32 %v291, %v289
        %294 = vst [vmem:[#allocation2] sm:$0xff] %v292
        %295 = vst [vmem:[#allocation2 + $0x8] sm:$0xff] %v293
        // Predicated region
        $region53: #{tpu_custom_call.1} parent=39 // pred_check
          %p296 = pneg %p278
        $region54: #{tpu_custom_call.1} parent=39 // pred_check_branch
          %298 = sbr.rel (%p296) target = $region56
        $region55: #{tpu_custom_call.1} parent=39 // pred_region
          %v299 = vld [vmem:[#allocation2] sm:$0xff]
          %v300 = vld [vmem:[#allocation2 + $0x8] sm:$0xff]
          %301 = vadd.xlane.f32.xlu0 %v299
          %v302 = vpop.xlane.xlu0 %301
          %303 = vadd.xlane.f32.xlu0 %v300
          %v304 = vpop.xlane.xlu0 %303
          %v305 = vmul.f32 %v302, 0.00390625
          %v306 = vmul.f32 %v304, 0.00390625
          %v307 = vld [vmem:[#allocation6] sm:$0x1f]
          %vm308 = vcmask 130048
          %v310 = vsel %vm308, %v307, 0
          %312 = vmatpush.msra.mxu0 0.0
          %313 = vmatpush.msra.mxu0 0.0
          %314 = vmatpush.msra.mxu0 0.0
          %315 = vmatpush.msra.mxu0 0.0
          %316 = vmatpush.msra.mxu0 0.0
          %317 = vmatpush.msra.mxu0 0.0
          %318 = vmatpush.msra.mxu0 0.0
          %319 = vmatpush.msra.mxu0 0.0
          %320 = vmatpush.msra.mxu0 0.0
          %321 = vmatpush.msra.mxu0 0.0
          %322 = vmatpush.msra.mxu0 0.0
          %323 = vmatpush.msra.mxu0 0.0
          %324 = vmatpush.msra.mxu0 0.0
          %325 = vmatpush.msra.mxu0 0.0
          %326 = vmatpush.msra.mxu0 %v306
          %327 = vmatpush.msra.mxu0 %v305
          %328 = vmatmul.f32.gmra.mxu0 %v310
          %v329 = vpop.f32.mrf.mxu0
          %v330 = vadd.f32 0.0, %v329
          %331 = vdwg.mxu0
          %v332 = vmax.f32 %v330, 0.0
          %v333 = vld [vmem:[%s2] sm:$0xf]
          %v334 = vld [vmem:[%s3] sm:$0xf]
          %vm335 = vcmask 39936
          %v337 = vsel %vm335, %v333, 0
          %vm339 = vcmask 1044480
          %v341 = vsel %vm339, %v332, 0
          %343 = vmatpush.msra.mxu0 0.0
          %344 = vmatpush.msra.mxu0 0.0
          %345 = vmatpush.msra.mxu0 0.0
          %346 = vmatpush.msra.mxu0 0.0
          %347 = vmatpush.msra.mxu0 0.0
          %348 = vmatpush.msra.mxu0 0.0
          %349 = vmatpush.msra.mxu0 0.0
          %350 = vmatpush.msra.mxu0 0.0
          %351 = vmatpush.msra.mxu0 0.0
          %352 = vmatpush.msra.mxu0 0.0
          %353 = vmatpush.msra.mxu0 0.0
          %354 = vmatpush.msra.mxu0 0.0
          %355 = vmatpush.msra.mxu0 0.0
          %356 = vmatpush.msra.mxu0 0.0
          %357 = vmatpush.msra.mxu0 0.0
          %358 = vmatpush.msra.mxu0 %v341
          %359 = vmatmul.f32.gmra.mxu0 %v337
          %v360 = vpop.f32.mrf.mxu0
          %v361 = vadd.f32 %v334, %v360
          %362 = vdwg.mxu0
          %s363 = sld [smem:[#allocation3]]
          %v364 = vstv %s363
          %v365 = vrcp.pop %v364
          %v366 = vmul.f32 %v364, %v365
          %v367 = vsub.f32 1.0, %v366
          %v368 = vmul.f32 %v365, %v367
          %v369 = vadd.f32 %v365, %v368
          %vm370 = vweird.f32 %v364
          %vm371 = vweird.f32 %v365
          %vm372 = vmor %vm370, %vm371
          %v373 = vsel %vm372, %v365, %v369
          %v374 = vand.u32 2147483647, %v364
          %vm375 = vcmp.eq.f32.partialorder %v374, 8.507059e+37
          %v376 = vand.u32 %v364, 2147483648
          %v377 = vor.u32 1.1754944e-38, %v376
          %v378 = vsel %vm375, %v377, %v373
          %s379 = vtos %v378
          %v380 = vstv %s379
          %v381 = vmul.f32 %v361, %v380
          %vm382 = vcmask 3072
          %v383 = vsel %vm382, %v381, -inf
          %v384 = vrot.slane %v383, 4
          %v385 = vmax.f32 %v383, %v384
          %v386 = vrot.slane %v385, 2
          %v387 = vmax.f32 %v385, %v386
          %v388 = vrot.slane %v387, 1
          %v389 = vmax.f32 %v387, %v388
          %v390 = vsub.f32 %v381, %v389
          %v391 = vmul.f32 %v390, 1.442695
          %v392 = vpow.pop %v391
          %v393 = vsel %vm382, %v392, 0.0
          %v394 = vrot.slane %v393, 4
          %v395 = vadd.f32 %v393, %v394
          %v396 = vrot.slane %v395, 2
          %v397 = vadd.f32 %v395, %v396
          %v398 = vrot.slane %v397, 1
          %v399 = vadd.f32 %v397, %v398
          %v400 = vrcp.pop %v399
          %v401 = vmul.f32 %v392, %v400
          %402 = vst.msk [vmem:[%s277] sm:$0xf] %vm382, %v401
        $region56: #{tpu_custom_call.1} parent=39 // pred_fallthru
          _
        %p403 = scmp.lt.s32.totalorder %s25, 1
        %s404 = scalar_select %p403, %s25, 1
        %s405 = smul.addr %s404, 4
        %s406 = scalar_lea.vmem %s5, %s405
        // Predicated region
        $region57: #{tpu_custom_call.1} parent=39 // pred_check
          %p407 = pneg %p163
        $region58: #{tpu_custom_call.1} parent=39 // pred_check_branch
          %409 = sbr.rel (%p407) target = $region60
        $region59: #{tpu_custom_call.1} parent=39 // pred_region
          _
        $region60: #{tpu_custom_call.1} parent=39 // pred_fallthru
          _
      $region40: #{tpu_custom_call.1} parent=5 // pred_fallthru
        _
      %p410 = scmp.le.s32.totalorder 2, %s16
      // Predicated region
      $region61: #{tpu_custom_call.1} parent=5 // pred_check
        %p411 = pneg %p410
      $region62: #{tpu_custom_call.1} parent=5 // pred_check_branch
        %413 = sbr.rel (%p411) target = $region64
      $region63: #{tpu_custom_call.1} parent=5 // pred_region
        %s414 = ssub.s32 %s16, 2
        // Predicated region
        $region65: #{tpu_custom_call.1} parent=63 // pred_check
          %p415 = pneg %p169
        $region66: #{tpu_custom_call.1} parent=63 // pred_check_branch
          %417 = sbr.rel (%p415) target = $region68
        $region67: #{tpu_custom_call.1} parent=63 // pred_region
          %p418 = scmp.lt.s32.totalorder %s27, 1
          %s419 = scalar_select %p418, %s27, 1
          %s420 = smul.addr %s419, 4
          %s421 = scalar_lea.vmem %s5, %s420
        $region68: #{tpu_custom_call.1} parent=63 // pred_fallthru
          _
      $region64: #{tpu_custom_call.1} parent=5 // pred_fallthru
        _
    $region6: #{tpu_custom_call.1} parent=1 // loop_footer
      %s20 = sadd.s32 1, %s16
    $region7: #{tpu_custom_call.1} parent=1 // loop_footer_branch
      %15 = sbr.rel target = $region3
    $region8: #{tpu_custom_call.1} parent=1 // loop_exit
      _
    %422 = vsyncpa [#allocation5], 1
    %s423 = scalar_lea.sflag [#allocation5], 1
    %424 = vsyncpa %s423, 1
    %425 = vsyncpa [#allocation7], 1

</llo_original>
